<compile_context>
chip_gen: v7x
topology: tpu7x:2x2x1
jax: 0.10.0
libtpu: 0.0.40
codegen_flags: <defaults>
</compile_context>

<pallas_src>
import jax
import jax.numpy as jnp
from jax.experimental import pallas as pl
from jax.experimental.pallas import tpu as pltpu


def _round_up(x, m):
    return ((x + m - 1) // m) * m


def _cdiv(a, b):
    return (a + b - 1) // b


def _vmem_capacity_bytes():
    """Physical VMEM per TensorCore (v5e/v6e: 128 MiB, v7x: 64 MiB)."""
    try:
        cap = int(pltpu.get_tpu_info().vmem_capacity_bytes)
        if cap > 0:
            return cap
    except Exception:
        pass
    return 64 * 2**20  # conservative default (v7x)


# ----- kernel -----------------------------------------------------------------

def _patch_proj_kernel(x_ref, w_ref, b_ref, o_ref):
    # x_ref: (tm, K) bf16, w_ref: (K, tn) bf16, b_ref: (1, tn) f32,
    # o_ref: (tm, tn) out dtype.  Single MXU matmul, f32 accumulation + bias add.
    acc = jnp.dot(x_ref[...], w_ref[...], preferred_element_type=jnp.float32)
    o_ref[...] = (acc + b_ref[...]).astype(o_ref.dtype)


def patch_projection_pallas(patches, w_kd, bias2d, *, tm, tn, vmem_limit, out_dtype):
    """patches: (N, K) bf16, w_kd: (K, D) bf16, bias2d: (1, D) f32 -> (N, D) out_dtype.

    K/D are not padded in HBM; edge blocks along N (and D when tiled) are masked
    by Pallas, so no padding/slicing is needed in the wrapper.
    """
    n, k = patches.shape
    d = w_kd.shape[1]
    grid = (_cdiv(n, tm), _cdiv(d, tn))
    return pl.pallas_call(
        _patch_proj_kernel,
        out_shape=jax.ShapeDtypeStruct((n, d), out_dtype),
        grid_spec=pltpu.PrefetchScalarGridSpec(
            num_scalar_prefetch=0,
            grid=grid,
            in_specs=[
                # x block index is constant across the (fast) j axis -> stays resident.
                pl.BlockSpec((tm, k), lambda i, j: (i, 0)),
                pl.BlockSpec((k, tn), lambda i, j: (0, j)),
                pl.BlockSpec((1, tn), lambda i, j: (0, j)),
            ],
            out_specs=pl.BlockSpec((tm, tn), lambda i, j: (i, j)),
        ),
        compiler_params=pltpu.CompilerParams(
            dimension_semantics=("parallel", "parallel"),
            vmem_limit_bytes=vmem_limit,
        ),
    )(patches, w_kd, bias2d)


# ----- module -----------------------------------------------------------------

class PatchEmbeddingPallas:
    """JAX/Pallas port of the PyTorch PatchEmbedding module."""

    def __init__(self, frame_size, patch_size, in_channels, embed_dim, num_frames,
                 key, out_dtype=jnp.bfloat16):
        if frame_size % patch_size != 0:
            raise ValueError("Frame size must be divisible by patch size.")
        self.frame_size = frame_size
        self.patch_size = patch_size
        self.in_channels = in_channels
        self.embed_dim = embed_dim
        self.num_frames = num_frames
        self.num_patches_h = frame_size // patch_size
        self.num_patches_w = frame_size // patch_size
        self.num_spatial_patches = self.num_patches_h * self.num_patches_w
        # bf16 output halves the dominant HBM write stream; use f32 if the
        # downstream consumer needs it.
        self.out_dtype = out_dtype

        P, C, D = patch_size, in_channels, embed_dim
        K = C * P * P
        self.patch_dim = K

        # nn.Conv3d(C, D, kernel_size=(1,P,P), stride=(1,P,P)) default init:
        # U(-b, b) with b = 1/sqrt(fan_in); weight (D, C, 1, P, P), bias (D,).
        kw_key, kb_key = jax.random.split(key)
        fan_in = C * 1 * P * P
        bound = 1.0 / (fan_in ** 0.5)
        self.weight = jax.random.uniform(
            kw_key, (D, C, 1, P, P), minval=-bound, maxval=bound, dtype=jnp.float32)
        self.bias = jax.random.uniform(
            kb_key, (D,), minval=-bound, maxval=bound, dtype=jnp.float32)

        # Kernel-ready parameters, computed ONCE: (D,C,1,P,P) -> (K,D), bf16
        # (half the HBM/VMEM bytes, native MXU rate).  No K/D padding in HBM.
        self.w_kd_bf16 = self.weight.reshape(D, K).T.astype(jnp.bfloat16)
        self.bias2d = self.bias.reshape(1, D)

        # Generation-aware VMEM budgets.
        vmem_cap = _vmem_capacity_bytes()
        self._vmem_cap = vmem_cap
        self._weight_resident_bytes = vmem_cap // 5   # ~12.8 MiB v7x / ~25.6 MiB v5e/v6e
        self._x_block_bytes = vmem_cap // 8           # ~8 MiB v7x / ~16 MiB v5e/v6e

        self._jit_forward = jax.jit(self._forward)

    # ----- tiling -------------------------------------------------------------

    def _select_tiles(self, N):
        K, D = self.patch_dim, self.embed_dim

        # Row tile: big tiles amortize the ~0.35us per-grid-step overhead, but
        # (a) keep the x block within ~VMEM/8, (b) aim for >= 2 parallel grid
        # steps so both v7x TensorCores get work, (c) bound row-padding waste to
        # a few rows (edge blocks are masked, so the waste is MXU cycles only).
        tm_cap = max(16, (self._x_block_bytes // (K * 2)) // 16 * 16)
        tm_max = min(1024, tm_cap)
        if N <= 16:
            tm = N                                 # single small block (full dim)
        else:
            n_i_target = max(2, _cdiv(N, tm_max))
            tm = min(tm_max, _round_up(_cdiv(N, n_i_target), 16))

        # Column tile: keep the whole (K, D) weight resident when it fits the
        # generation-dependent threshold (fetched exactly once); only tile D for
        # very large projections (tiling re-streams the weight per row block).
        if K * D * 2 <= self._weight_resident_bytes or D <= 256:
            tn = D
        else:
            tn = 128
            for cand in (2048, 1024, 512, 256):
                if cand <= D and K * cand * 2 <= self._weight_resident_bytes:
                    tn = cand
                    break
        return tm, tn

    # ----- forward ------------------------------------------------------------

    def _forward(self, x):
        B, T, C, H, W = x.shape
        P = self.patch_size
        nh, nw = self.num_patches_h, self.num_patches_w
        D = self.embed_dim
        K = self.patch_dim
        N = B * T * nh * nw

        # Patchify: (B,T,C,H,W) -> (B,T,nh,nw,C,P,P) -> (N, K), row order (b,t,h,w),
        # K order (c,kh,kw) matching the Conv3d weight flattening.  Fused by XLA with
        # the bf16 cast into a single copy (bf16 intermediate, unpadded K).
        # TODO(synk): fuse this patchify into the Pallas pipeline (see header note).
        xp = x.reshape(B, T, C, nh, P, nw, P)
        xp = jnp.transpose(xp, (0, 1, 3, 5, 2, 4, 6))
        patches = xp.reshape(N, K).astype(jnp.bfloat16)

        tm, tn = self._select_tiles(N)

        out_bytes = jnp.dtype(self.out_dtype).itemsize
        needed = 2 * (tm * K * 2 + K * tn * 2 + tn * 4 + tm * tn * out_bytes)
        vmem_limit = int(min(max(needed + 4 * 2**20, 32 * 2**20),
                             (self._vmem_cap * 7) // 8))

        y = patch_projection_pallas(
            patches, self.w_kd_bf16, self.bias2d,
            tm=tm, tn=tn, vmem_limit=vmem_limit, out_dtype=self.out_dtype)
        # Kernel output is exactly (N, D): no slice, no extra HBM round trip.
        return y.reshape(B, T * nh * nw, D)   # 'b (t h w) d'

    def __call__(self, x):
        B, T, C, H, W = x.shape
        if C != self.in_channels:
            raise ValueError("channel mismatch")
        if H != self.frame_size or W != self.frame_size:
            # TODO(synk): bicubic align_corners=False resize path not implemented.
            raise NotImplementedError("bicubic resize path not implemented")
        return self._jit_forward(x)


# ----- reference + demo -------------------------------------------------------

def _reference(x, module, bf16_operands, bf16_output):
    B, T, C, H, W = x.shape
    P = module.patch_size
    nh, nw = module.num_patches_h, module.num_patches_w
    D = module.embed_dim
    xp = x.reshape(B, T, C, nh, P, nw, P)
    xp = jnp.transpose(xp, (0, 1, 3, 5, 2, 4, 6)).reshape(-1, C * P * P)
    w = module.weight.reshape(D, -1)
    if bf16_operands:   # same operand rounding as the kernel, exact f32 math
        xp = xp.astype(jnp.bfloat16).astype(jnp.float32)
        w = w.astype(jnp.bfloat16).astype(jnp.float32)
    ref = jnp.dot(xp, w.T, precision=jax.lax.Precision.HIGHEST) + module.bias
    if bf16_output:     # same output rounding as the bf16-out kernel
        ref = ref.astype(jnp.bfloat16).astype(jnp.float32)
    return ref.reshape(B, T * nh * nw, D)


if __name__ == "__main__":
    key = jax.random.PRNGKey(0)
    k_param, k_x, k_param2, k_x2 = jax.random.split(key, 4)

    # Config 1: B=2, T=2 frames, C=4 channels, 16x16 frames, 4x4 patches, D=32.
    # Default bf16 output.  N=64 -> two parallel row blocks (both v7x TCs busy).
    frame_size, patch_size, in_channels, embed_dim, num_frames = 16, 4, 4, 32, 2
    B = 2
    module = PatchEmbeddingPallas(frame_size, patch_size, in_channels,
                                  embed_dim, num_frames, k_param)
    x = jax.random.normal(k_x, (B, num_frames, in_channels, frame_size, frame_size),
                          dtype=jnp.float32)
    out = jax.block_until_ready(module(x))
    nh = nw = frame_size // patch_size
    assert out.shape == (B, num_frames * nh * nw, embed_dim)
    assert out.dtype == jnp.bfloat16
    out_f32 = out.astype(jnp.float32)
    # Tight check vs a reference using the same bf16 operand + output rounding.
    ref_bf = _reference(x, module, bf16_operands=True, bf16_output=True)
    assert jnp.allclose(out_f32, ref_bf, atol=2e-2, rtol=2e-2)
    # Loose check vs the full-f32 reference (bf16 quantization of operands/output).
    ref_f32 = _reference(x, module, bf16_operands=False, bf16_output=False)
    assert jnp.allclose(out_f32, ref_f32, atol=5e-2, rtol=5e-2)

    # Config 2: exercises unpadded K=48, non-128-multiple D=20, odd N=9 (masked
    # edge row block), and the f32-output path.
    module2 = PatchEmbeddingPallas(12, 4, 3, 20, 1, k_param2, out_dtype=jnp.float32)
    x2 = jax.random.normal(k_x2, (1, 1, 3, 12, 12), dtype=jnp.float32)
    out2 = jax.block_until_ready(module2(x2))
    assert out2.shape == (1, 9, 20)
    assert out2.dtype == jnp.float32
    ref2 = _reference(x2, module2, bf16_operands=True, bf16_output=False)
    assert jnp.allclose(out2, ref2, atol=1e-3, rtol=1e-3)

    print("KERNEL_OK")
</pallas_src>

<mosaic_0001>
module attributes {stable_mosaic.version = 11 : i64} {
  func.func @_patch_proj_kernel(%arg0: i32, %arg1: i32, %arg2: memref<32x64xbf16, #tpu.memory_space<vmem>>, %arg3: memref<64x32xbf16, #tpu.memory_space<vmem>>, %arg4: memref<1x32xf32, #tpu.memory_space<vmem>>, %arg5: memref<32x32xbf16, #tpu.memory_space<vmem>>) attributes {dimension_semantics = [#tpu.dimension_semantics<parallel>, #tpu.dimension_semantics<parallel>], iteration_bounds = array<i64: 2, 1>, scalar_prefetch = 0 : i64, scratch_operands = 0 : i64, tpu.core_type = #tpu.core_type<tc>, window_params = [{transform_indices = @transform_0, window_bounds = array<i64: 32, 64>}, {transform_indices = @transform_1, window_bounds = array<i64: 64, 32>}, {transform_indices = @transform_2, window_bounds = array<i64: 1, 32>}, {transform_indices = @transform_3, window_bounds = array<i64: 32, 32>}]} {
    %c0 = arith.constant 0 : index
    %c0_0 = arith.constant 0 : index
    %0 = vector.load %arg2[%c0, %c0_0] : memref<32x64xbf16, #tpu.memory_space<vmem>>, vector<32x64xbf16>
    %c0_1 = arith.constant 0 : index
    %c0_2 = arith.constant 0 : index
    %1 = vector.load %arg3[%c0_1, %c0_2] : memref<64x32xbf16, #tpu.memory_space<vmem>>, vector<64x32xbf16>
    %cst = arith.constant dense<0.000000e+00> : vector<32x32xf32>
    %2 = tpu.matmul %0, %1, %cst {dimension_numbers = #tpu.dot_dimension_numbers<[1], [0], [0], [1], [0, 0, 1, 1], [], []>} : vector<32x64xbf16>, vector<64x32xbf16>, vector<32x32xf32> -> vector<32x32xf32>
    %c0_3 = arith.constant 0 : index
    %c0_4 = arith.constant 0 : index
    %3 = vector.load %arg4[%c0_3, %c0_4] : memref<1x32xf32, #tpu.memory_space<vmem>>, vector<1x32xf32>
    %4 = vector.broadcast %3 : vector<1x32xf32> to vector<32x32xf32>
    %5 = arith.addf %2, %4 : vector<32x32xf32>
    %6 = arith.truncf %5 : vector<32x32xf32> to vector<32x32xbf16>
    %c0_5 = arith.constant 0 : index
    %c0_6 = arith.constant 0 : index
    %7 = vector.load %arg5[%c0_5, %c0_6] : memref<32x32xbf16, #tpu.memory_space<vmem>>, vector<32x32xbf16>
    tpu.vector_store %arg5[%c0_5, %c0_6], %6 {strides = array<i32>} : memref<32x32xbf16, #tpu.memory_space<vmem>>, vector<32x32xbf16>,
    return
  }
  func.func @transform_0(%arg0: i32, %arg1: i32) -> (i32, i32) {
    %c0_i32 = arith.constant 0 : i32
    %c0_i32_0 = arith.constant 0 : i32
    return %arg0, %c0_i32 : i32, i32
  }
  func.func @transform_1(%arg0: i32, %arg1: i32) -> (i32, i32) {
    %c0_i32 = arith.constant 0 : i32
    %c0_i32_0 = arith.constant 0 : i32
    return %c0_i32, %arg1 : i32, i32
  }
  func.func @transform_2(%arg0: i32, %arg1: i32) -> (i32, i32) {
    %c0_i32 = arith.constant 0 : i32
    %c0_i32_0 = arith.constant 0 : i32
    return %c0_i32, %arg1 : i32, i32
  }
  func.func @transform_3(%arg0: i32, %arg1: i32) -> (i32, i32) {
    %c0_i32 = arith.constant 0 : i32
    return %arg0, %arg1 : i32, i32
  }
}

</mosaic_0001>

<llo_original>
// kernel: _forward.1
$region0: #{_forward.1}
  #allocation0 [shape = 'u32[]', space=smem, size = 0x4, offset = 0x4, fixed_abs, tag = 'smem constant byte address 0x4 - core index']
  #allocation1 [shape = 'u32[144,128]{1,0:T(1,128)}', space=vmem, size = 0x12000, scoped, tag = 'internal scratch']
  %s0 = inlined_call_operand.vmem [shape: bf16[64,64], index: 0, kind: input, shape index: {}]
  %s1 = inlined_call_operand.vmem [shape: bf16[64,32], index: 1, kind: input, shape index: {}]
  %s2 = inlined_call_operand.vmem [shape: f32[1,32], index: 2, kind: input, shape index: {}]
  %s3 = inlined_call_operand.hbm [shape: bf16[64,32], index: 3, kind: output, shape index: {}]
  %s4 = sld [smem:[#allocation0]]
  $region45: #{_forward.1} parent=0
    _
  %s6 = ssub.s32 1, %s4
  %s7 = scalar_select 0, %s6, %s4
  $region1: #{_forward.1} parent=0
    #allocation2 [shape = 'u8[16384]{0}', space=vmem, size = 0x4000, scoped, tag = 'output window, operand 0']
    #allocation3 [shape = 's32[2]{0}', space=sflag, size = 0x8, scoped, tag = 'scoped memory for _forward.1']
    %8 = vsyncpa [#allocation3], 0
    %s9 = scalar_lea.sflag [#allocation3], 1
    %10 = vsyncpa %s9, 0
    loop: start=0, step=1, limit=4
    $region2: #{_forward.1} parent=1 // loop_pre_header
      _
    $region3: #{_forward.1} parent=1 // loop_header
      %s12 = sphi 0, %s16
      %p13 = scmp.ge.s32.totalorder %s12, 4
      %s19 = sphi 0, %s31
      %s20 = sphi 0, %s27
      %s21 = sphi 0, %s19
      %s22 = sphi 0, %s20
      %s23 = sphi 0, %s21
      %s24 = sphi 0, %s22
      %s34 = sphi 0, %s36
      %s37 = sphi 0, %s34
      %s38 = sphi 0, %s37
      %s54 = sphi 0, %s38
      %s60 = sphi 0, %s62
      %s63 = sphi 0, %s60
      %s64 = sphi 0, %s63
      %s80 = sphi 0, %s64
      %s86 = sphi 0, %s88
      %s89 = sphi 0, %s86
      %s90 = sphi 0, %s89
      %s106 = sphi 0, %s90
      %s114 = sphi 0, %s116
      %s117 = sphi 0, %s114
      %s118 = sphi 0, %s117
      %s134 = sphi 0, %s118
    $region4: #{_forward.1} parent=1 // loop_header_branch
      %15 = sbr.rel (%p13) target = $region8
    $region5: #{_forward.1} parent=1 // loop_body
      %s17 = ssub.s32 %s12, 1
      %s18 = ssub.s32 %s12, 2
      %s25 = sadd.s32 1, %s20
      %p26 = scmp.ge.s32.totalorder %s25, 1
      %s27 = scalar_select %p26, 0, %s25
      %s28 = sadd.s32 1, %s19
      %s29 = scalar_select %p26, %s28, %s19
      %p30 = scmp.ge.s32.totalorder %s29, 2
      %s31 = scalar_select %p30, 0, %s29
      %s32 = ssub.s32 %s19, %s31
      %p33 = scmp.eq.s32.totalorder %s32, 0
      %s35 = sadd.s32 %s34, 1
      %s36 = scalar_select %p33, %s34, %s35
      %p39 = pneg %p33
      %p40 = scmp.eq.s32.totalorder %s12, 1
      %p41 = por %p39, %p40
      %p42 = scmp.ne.s32.totalorder %s34, %s37
      %p43 = scmp.eq.s32.totalorder %s12, 0
      %p44 = por %p42, %p43
      %p45 = scmp.ne.s32.totalorder %s34, %s37
      %p46 = scmp.eq.s32.totalorder %s17, 1
      %p47 = por %p45, %p46
      %p48 = scmp.ne.s32.totalorder %s37, %s38
      %p49 = scmp.eq.s32.totalorder %s17, 0
      %p50 = por %p48, %p49
      %p51 = scmp.ne.s32.totalorder %s37, %s38
      %p52 = scmp.eq.s32.totalorder %s18, 1
      %p53 = por %p51, %p52
      %p55 = scmp.ne.s32.totalorder %s38, %s54
      %p56 = scmp.eq.s32.totalorder %s18, 0
      %p57 = por %p55, %p56
      %s58 = ssub.s32 %s20, %s27
      %p59 = scmp.eq.s32.totalorder %s58, 0
      %s61 = sadd.s32 %s60, 1
      %s62 = scalar_select %p59, %s60, %s61
      %p65 = pneg %p59
      %p66 = scmp.eq.s32.totalorder %s12, 1
      %p67 = por %p65, %p66
      %p68 = scmp.ne.s32.totalorder %s60, %s63
      %p69 = scmp.eq.s32.totalorder %s12, 0
      %p70 = por %p68, %p69
      %p71 = scmp.ne.s32.totalorder %s60, %s63
      %p72 = scmp.eq.s32.totalorder %s17, 1
      %p73 = por %p71, %p72
      %p74 = scmp.ne.s32.totalorder %s63, %s64
      %p75 = scmp.eq.s32.totalorder %s17, 0
      %p76 = por %p74, %p75
      %p77 = scmp.ne.s32.totalorder %s63, %s64
      %p78 = scmp.eq.s32.totalorder %s18, 1
      %p79 = por %p77, %p78
      %p81 = scmp.ne.s32.totalorder %s64, %s80
      %p82 = scmp.eq.s32.totalorder %s18, 0
      %p83 = por %p81, %p82
      %s84 = ssub.s32 %s20, %s27
      %p85 = scmp.eq.s32.totalorder %s84, 0
      %s87 = sadd.s32 %s86, 1
      %s88 = scalar_select %p85, %s86, %s87
      %p91 = pneg %p85
      %p92 = scmp.eq.s32.totalorder %s12, 1
      %p93 = por %p91, %p92
      %p94 = scmp.ne.s32.totalorder %s86, %s89
      %p95 = scmp.eq.s32.totalorder %s12, 0
      %p96 = por %p94, %p95
      %p97 = scmp.ne.s32.totalorder %s86, %s89
      %p98 = scmp.eq.s32.totalorder %s17, 1
      %p99 = por %p97, %p98
      %p100 = scmp.ne.s32.totalorder %s89, %s90
      %p101 = scmp.eq.s32.totalorder %s17, 0
      %p102 = por %p100, %p101
      %p103 = scmp.ne.s32.totalorder %s89, %s90
      %p104 = scmp.eq.s32.totalorder %s18, 1
      %p105 = por %p103, %p104
      %p107 = scmp.ne.s32.totalorder %s90, %s106
      %p108 = scmp.eq.s32.totalorder %s18, 0
      %p109 = por %p107, %p108
      %s110 = ssub.s32 %s19, %s31
      %s111 = ssub.s32 %s20, %s27
      %s112 = sor.u32 %s110, %s111
      %p113 = scmp.eq.s32.totalorder %s112, 0
      %s115 = sadd.s32 %s114, 1
      %s116 = scalar_select %p113, %s114, %s115
      %p119 = pneg %p113
      %p120 = scmp.eq.s32.totalorder %s12, 1
      %p121 = por %p119, %p120
      %p122 = scmp.ne.s32.totalorder %s114, %s117
      %p123 = scmp.eq.s32.totalorder %s12, 0
      %p124 = por %p122, %p123
      %p125 = scmp.ne.s32.totalorder %s114, %s117
      %p126 = scmp.eq.s32.totalorder %s17, 1
      %p127 = por %p125, %p126
      %p128 = scmp.ne.s32.totalorder %s117, %s118
      %p129 = scmp.eq.s32.totalorder %s17, 0
      %p130 = por %p128, %p129
      %p131 = scmp.ne.s32.totalorder %s117, %s118
      %p132 = scmp.eq.s32.totalorder %s18, 1
      %p133 = por %p131, %p132
      %p135 = scmp.ne.s32.totalorder %s118, %s134
      %p136 = scmp.eq.s32.totalorder %s18, 0
      %p137 = por %p135, %p136
      %p138 = scmp.le.s32.totalorder 1, %s12
      %p139 = scmp.lt.s32.totalorder %s12, 3
      %p140 = pnand %p138, %p139
      %p141 = pneg %p140
      // Predicated region
      $region9: #{_forward.1} parent=5 // pred_check
        _
      $region10: #{_forward.1} parent=5 // pred_check_branch
        %143 = sbr.rel (%p140) target = $region12
      $region11: #{_forward.1} parent=5 // pred_region
        %s144 = ssub.s32 %s12, 1
        // Predicated region
        $region13: #{_forward.1} parent=11 // pred_check
          %p145 = pneg %p76
        $region14: #{_forward.1} parent=11 // pred_check_branch
          %147 = sbr.rel (%p145) target = $region16
        $region15: #{_forward.1} parent=11 // pred_region
          %p148 = scmp.lt.s32.totalorder %s22, 0
          %s149 = scalar_select %p148, %s22, 0
          %s150 = smul.addr %s149, 4
          %s151 = scalar_lea.vmem %s1, %s150
        $region16: #{_forward.1} parent=11 // pred_fallthru
          _
        // Predicated region
        $region17: #{_forward.1} parent=11 // pred_check
          %p152 = pneg %p102
        $region18: #{_forward.1} parent=11 // pred_check_branch
          %154 = sbr.rel (%p152) target = $region20
        $region19: #{_forward.1} parent=11 // pred_region
          %p155 = scmp.lt.s32.totalorder %s22, 0
          %s156 = scalar_select %p155, %s22, 0
          %s157 = scalar_lea.vmem %s2, %s156
        $region20: #{_forward.1} parent=11 // pred_fallthru
          _
      $region12: #{_forward.1} parent=5 // pred_fallthru
        _
      %p158 = scmp.lt.s32.totalorder %s12, 2
      // Predicated region
      $region21: #{_forward.1} parent=5 // pred_check
        %p159 = pneg %p158
      $region22: #{_forward.1} parent=5 // pred_check_branch
        %161 = sbr.rel (%p159) target = $region24
      $region23: #{_forward.1} parent=5 // pred_region
        // Predicated region
        $region25: #{_forward.1} parent=23 // pred_check
          %p162 = pneg %p44
        $region26: #{_forward.1} parent=23 // pred_check_branch
          %164 = sbr.rel (%p162) target = $region28
        $region27: #{_forward.1} parent=23 // pred_region
          %s165 = smul.u32 4, %s19
          %p166 = scmp.lt.s32.totalorder %s165, 7
          %s167 = scalar_select %p166, %s165, 7
          %s168 = smul.addr %s167, 4
          %s169 = scalar_lea.vmem %s0, %s168
          %s170 = smul.u32 4, %s19
        $region28: #{_forward.1} parent=23 // pred_fallthru
          _
      $region24: #{_forward.1} parent=5 // pred_fallthru
        _
      %p171 = scmp.le.s32.totalorder 1, %s12
      %p172 = scmp.lt.s32.totalorder %s12, 3
      %p173 = pnand %p171, %p172
      %p174 = pneg %p173
      // Predicated region
      $region29: #{_forward.1} parent=5 // pred_check
        _
      $region30: #{_forward.1} parent=5 // pred_check_branch
        %176 = sbr.rel (%p173) target = $region32
      $region31: #{_forward.1} parent=5 // pred_region
        %s177 = ssub.s32 %s12, 1
        %s178 = smul.u32 4, %s21
        %p179 = scmp.lt.s32.totalorder %s178, 7
        %s180 = scalar_select %p179, %s178, 7
        %s181 = smul.addr %s180, 4
        %s182 = scalar_lea.vmem %s0, %s181
        %p183 = pneg %p50
        %p184 = pneg %p47
        %p185 = scmp.lt.s32.totalorder %s22, 0
        %s186 = scalar_select %p185, %s22, 0
        %s187 = smul.addr %s186, 4
        %s188 = scalar_lea.vmem %s1, %s187
        %p189 = pneg %p76
        %p190 = pneg %p73
        %p191 = scmp.lt.s32.totalorder %s22, 0
        %s192 = scalar_select %p191, %s22, 0
        %s193 = scalar_lea.vmem %s2, %s192
        %p194 = pneg %p102
        %p195 = pneg %p99
        %p196 = pneg %p130
        %p197 = pneg %p127
        %s198 = sand.u32 %s117, 1
        %s199 = scalar_lea.sflag [#allocation3], %s198
        %s200 = sand.u32 %s117, 1
        %s201 = smul.addr %s200, 16
        %s202 = scalar_lea.vmem [#allocation2], %s201
        %s203 = smul.u32 4, %s21
        %p204 = scmp.lt.s32.totalorder %s203, 7
        %s205 = scalar_select %p204, %s203, 7
        %s206 = smul.addr %s205, 4
        %s207 = scalar_lea.vmem %s0, %s206
        %s208 = smul.u32 4, %s21
        %p209 = scmp.lt.s32.totalorder %s22, 0
        %s210 = scalar_select %p209, %s22, 0
        %s211 = smul.addr %s210, 4
        %s212 = scalar_lea.vmem %s1, %s211
        %p213 = scmp.lt.s32.totalorder %s22, 0
        %s214 = scalar_select %p213, %s22, 0
        %s215 = scalar_lea.vmem %s2, %s214
        %s216 = smul.u32 4, %s21
        %v218 = vld [vmem:[%s207] sm:$0xf]
        %v219 = vld [vmem:[%s207 + $0x4] sm:$0xf]
        %v220 = vld [vmem:[%s207 + $0x8] sm:$0xf]
        %v221 = vld [vmem:[%s207 + $0xc] sm:$0xf]
        %v222 = vld [vmem:[%s212] sm:$0xf]
        %v223 = vld [vmem:[%s212 + $0x4] sm:$0xf]
        %v224 = vld [vmem:[%s212 + $0x8] sm:$0xf]
        %v225 = vld [vmem:[%s212 + $0xc] sm:$0xf]
        %v226 = vld [vmem:[%s212 + $0x10] sm:$0xf]
        %v227 = vld [vmem:[%s212 + $0x14] sm:$0xf]
        %v228 = vld [vmem:[%s212 + $0x18] sm:$0xf]
        %v229 = vld [vmem:[%s212 + $0x1c] sm:$0xf]
        %v230 = vld [vmem:[%s215] sm:$0x1]
        %v232 = vlaneseq
        %v233 = vshrl.u32 %v232, 7
        %v234 = vsub.s32 0, %v233
        %v235 = vrot.slane %v230, %v234
        %v241 = vunpack.c.l.b16 %v218
        %v242 = vunpack.c.l.b16 %v219
        %v243 = vunpack.c.l.b16 %v220
        %v244 = vunpack.c.l.b16 %v221
        %v245 = vpack.c.b16 %v242, %v241
        %v246 = vpack.c.b16 %v244, %v243
        %v255 = vunpack.c.l.b16 %v222
        %v256 = vunpack.c.l.b16 %v223
        %v257 = vunpack.c.l.b16 %v224
        %v258 = vunpack.c.l.b16 %v225
        %v259 = vunpack.c.l.b16 %v226
        %v260 = vunpack.c.l.b16 %v227
        %v261 = vunpack.c.l.b16 %v228
        %v262 = vunpack.c.l.b16 %v229
        %v263 = vpack.c.b16 %v256, %v255
        %v264 = vpack.c.b16 %v258, %v257
        %v265 = vpack.c.b16 %v260, %v259
        %v266 = vpack.c.b16 %v262, %v261
        %vm271 = vcmask 523264
        %v273 = vsel %vm271, %v245, 0
        %v276 = vsel %vm271, %v246, 0
        %278 = vmatprep.subr.bf16.mxu0 0
        %279 = vmatpush1.bf16.msra.mxu0 %v263
        %280 = vmatprep.subr.bf16.mxu0 0
        %281 = vmatpush1.bf16.msra.mxu0 %v264
        %282 = vmatprep.subr.bf16.mxu0 0
        %283 = vmatpush1.bf16.msra.mxu0 %v265
        %284 = vmatprep.subr.bf16.mxu0 0
        %285 = vmatpush1.bf16.msra.mxu0 %v266
        %286 = vmatprep.subr.bf16.mxu0 0
        %287 = vmatpush1.bf16.msra.mxu0 0
        %288 = vmatprep.subr.bf16.mxu0 0
        %289 = vmatpush1.bf16.msra.mxu0 0
        %290 = vmatprep.subr.bf16.mxu0 0
        %291 = vmatpush1.bf16.msra.mxu0 0
        %292 = vmatprep.subr.bf16.mxu0 0
        %293 = vmatpush1.bf16.msra.mxu0 0
        %294 = vmatprep.subr.bf16.mxu0 0
        %295 = vmatpush1.bf16.msra.mxu0 0
        %296 = vmatprep.subr.bf16.mxu0 0
        %297 = vmatpush1.bf16.msra.mxu0 0
        %298 = vmatprep.subr.bf16.mxu0 0
        %299 = vmatpush1.bf16.msra.mxu0 0
        %300 = vmatprep.subr.bf16.mxu0 0
        %301 = vmatpush1.bf16.msra.mxu0 0
        %302 = vmatprep.subr.bf16.mxu0 0
        %303 = vmatpush1.bf16.msra.mxu0 0
        %304 = vmatprep.subr.bf16.mxu0 0
        %305 = vmatpush1.bf16.msra.mxu0 0
        %306 = vmatprep.subr.bf16.mxu0 0
        %307 = vmatpush1.bf16.msra.mxu0 0
        %308 = vmatprep.subr.bf16.mxu0 0
        %309 = vmatpush1.bf16.msra.mxu0 0
        %310 = vmatprep.mubr.bf16.mxu0 0
        %311 = vmatmul.mubr.bf16.gmra.mrb[0].mxu0 %v273
        %v312 = vpop.f32.mrb[0].mxu0
        %v313 = vadd.f32 %v235, %v312
        %v314 = vpop.f32.mrb[0].mxu0
        %v315 = vpop.f32.mrb[0].mxu0
        %v316 = vadd.f32 %v235, %v315
        %v317 = vpop.f32.mrb[0].mxu0
        %318 = vmatprep.mubr.bf16.mxu0 0
        %319 = vmatmul.mubr.bf16.gmra.mrb[0].mxu0 %v276
        %v320 = vpop.f32.mrb[0].mxu0
        %v321 = vadd.f32 %v235, %v320
        %v322 = vpop.f32.mrb[0].mxu0
        %v323 = vpop.f32.mrb[0].mxu0
        %v324 = vadd.f32 %v235, %v323
        %v325 = vpop.f32.mrb[0].mxu0
        %326 = vdwg.mxu0
        %v327 = vpack.c.bf16 %v316, %v313
        %v328 = vpack.c.bf16 %v324, %v321
        %v331 = vunpack.c.l.b16 %v327
        %v332 = vunpack.c.h.b16 %v327
        %v333 = vunpack.c.l.b16 %v328
        %v334 = vunpack.c.h.b16 %v328
        %v335 = vpack.c.b16 %v331, %v331
        %v336 = vpack.c.b16 %v332, %v332
        %v337 = vpack.c.b16 %v333, %v333
        %v338 = vpack.c.b16 %v334, %v334
        %vm343 = vcmask 257024
        %344 = vst.msk [vmem:[%s202] sm:$0xf] %vm343, %v335
        %345 = vst.msk [vmem:[%s202 + $0x4] sm:$0xf] %vm343, %v336
        %346 = vst.msk [vmem:[%s202 + $0x8] sm:$0xf] %vm343, %v337
        %347 = vst.msk [vmem:[%s202 + $0xc] sm:$0xf] %vm343, %v338
        %s348 = sand.u32 %s117, 1
        %s349 = scalar_lea.sflag [#allocation3], %s348
        %s350 = sand.u32 %s117, 1
        %s351 = smul.addr %s350, 16
        %s352 = scalar_lea.vmem [#allocation2], %s351
        // Predicated region
        $region33: #{_forward.1} parent=31 // pred_check
          %p353 = pneg %p127
        $region34: #{_forward.1} parent=31 // pred_check_branch
          %355 = sbr.rel (%p353) target = $region36
        $region35: #{_forward.1} parent=31 // pred_region
          %s356 = smul.u32 4, %s21
          %s358 = ssub.s32 256, 256
          %359 = vsyncadd %s349, %s358
          %s360 = sadd.s32 %s22, %s356
          %s361 = smul.addr %s360, 64
          %s362 = scalar_lea.hbm %s3, %s361
          %s363 = sshll.u32 %s352, 4
          %s364 = int_to_ptr.vmem [resolvable:$true] %s363
          %369 = dma.vmem_to_hbm [thread:$0]  %s364, 256, %s362, %s349, 64, 64, 4
        $region36: #{_forward.1} parent=31 // pred_fallthru
          _
      $region32: #{_forward.1} parent=5 // pred_fallthru
        _
      %p370 = scmp.le.s32.totalorder 2, %s12
      // Predicated region
      $region37: #{_forward.1} parent=5 // pred_check
        %p371 = pneg %p370
      $region38: #{_forward.1} parent=5 // pred_check_branch
        %373 = sbr.rel (%p371) target = $region40
      $region39: #{_forward.1} parent=5 // pred_region
        %s374 = ssub.s32 %s12, 2
        // Predicated region
        $region41: #{_forward.1} parent=39 // pred_check
          %p375 = pneg %p133
        $region42: #{_forward.1} parent=39 // pred_check_branch
          %377 = sbr.rel (%p375) target = $region44
        $region43: #{_forward.1} parent=39 // pred_region
          %s378 = sand.u32 %s118, 1
          %s379 = scalar_lea.sflag [#allocation3], %s378
          %s380 = sand.u32 %s118, 1
          %s381 = smul.addr %s380, 16
          %s382 = scalar_lea.vmem [#allocation2], %s381
          %383 = dma.done %s379, 256
        $region44: #{_forward.1} parent=39 // pred_fallthru
          _
      $region40: #{_forward.1} parent=5 // pred_fallthru
        _
    $region6: #{_forward.1} parent=1 // loop_footer
      %s16 = sadd.s32 1, %s12
    $region7: #{_forward.1} parent=1 // loop_footer_branch
      %11 = sbr.rel target = $region3
    $region8: #{_forward.1} parent=1 // loop_exit
      _
    %384 = vsyncpa [#allocation3], 1
    %s385 = scalar_lea.sflag [#allocation3], 1
    %386 = vsyncpa %s385, 1

</llo_original>
